<compile_context>
chip_gen: v7x
topology: tpu7x:2x2x1
jax: 0.10.0
libtpu: 0.0.40
codegen_flags: <defaults>
</compile_context>

<pallas_src>
import jax
import jax.numpy as jnp
from jax.experimental import pallas as pl
from jax.experimental.pallas import tpu as pltpu


def _residual_generator_kernel(img_ref, w_ref, b_ref, out_ref):
    # img_ref: (C, S, 128) block of one image, spatial dense on (sublane, lane)
    # w_ref:   (C, C) 1x1-conv weight, in_ch x out_ch (SMEM, scalar reads)
    # b_ref:   (C,)   bias (SMEM, scalar reads)
    # out_ref: (C, S, 128)
    c = img_ref.shape[0]
    eps = 1e-08

    for co in range(c):
        # Synthetic network: 1x1 conv as an unrolled VPU channel mix with
        # scalar weights from SMEM.  Read each channel at point of use so
        # live ranges stay short (no list of full-tile temporaries).
        net = img_ref[0].astype(jnp.float32) * w_ref[0, co]
        for ci in range(1, c):
            net = net + img_ref[ci].astype(jnp.float32) * w_ref[ci, co]
        net = net + b_ref[co]

        # make_residual(img, net) = sigmoid(-log(1/(clamp(img)+eps) - 1) + net)
        # With q = clamp(img) + eps this is exactly q / (q + (1-q) * exp(-net)):
        # one EUP exp + one EUP reciprocal instead of log + exp + two divides.
        q = jnp.clip(img_ref[co].astype(jnp.float32), 0.001, 0.999) + eps
        denom = q + (1.0 - q) * jnp.exp(-net)
        out_ref[co] = (q * pl.reciprocal(denom, approx=False)).astype(out_ref.dtype)


def residual_generator(img_nchw, weight, bias, *, target_block_bytes=2 << 20):
    """img_nchw: (N, C, H, W); weight: (C, C) in->out; bias: (C,)."""
    n, c, h, w = img_nchw.shape
    hw = h * w
    itemsize = jnp.dtype(img_nchw.dtype).itemsize

    if hw % 128 == 0:
        # Free view: spatial split across (sublane-rows, 128 lanes).
        rows = hw // 128
        img = img_nchw.reshape(n, c, rows, 128)
        padded_hw = None
    else:
        # Rare ragged-lane path: one pad so the 128-lane view exists.
        # TODO(synk): could be avoided with an in-kernel iota mask on the tail.
        rows = pl.cdiv(hw, 128)
        padded_hw = rows * 128
        img = jnp.pad(img_nchw.reshape(n, c, hw),
                      ((0, 0), (0, 0), (0, padded_hw - hw)),
                      constant_values=0.5).reshape(n, c, rows, 128)

    # Rows per block: multiple of 8 sublanes, sized for ~target_block_bytes of
    # input.  2 MiB blocks: good overhead amortization on v6e/v7x, and
    # double-buffered in+out (~8 MiB) still fits v5e's 16 MiB scoped default.
    s = max(8, (target_block_bytes // (itemsize * c * 128)) // 8 * 8)
    if s >= rows:
        s = rows  # full extent is always a legal block shape

    grid = (n, pl.cdiv(rows, s))

    out = pl.pallas_call(
        _residual_generator_kernel,
        out_shape=jax.ShapeDtypeStruct((n, c, rows, 128), img_nchw.dtype),
        grid_spec=pltpu.PrefetchScalarGridSpec(
            num_scalar_prefetch=0,
            grid=grid,
            in_specs=[
                # (1, C, S, 128) image block; leading batch dim squeezed out.
                pl.BlockSpec((None, c, s, 128), lambda i, j: (i, 0, j, 0)),
                # Tiny weight / bias as SMEM scalars (no padded VMEM tiles,
                # no per-step broadcast of the bias).
                pl.BlockSpec(memory_space=pltpu.MemorySpace.SMEM),
                pl.BlockSpec(memory_space=pltpu.MemorySpace.SMEM),
            ],
            out_specs=pl.BlockSpec((None, c, s, 128), lambda i, j: (i, 0, j, 0)),
        ),
        compiler_params=pltpu.CompilerParams(
            dimension_semantics=("parallel", "parallel")),
    )(img, weight, bias)

    if padded_hw is None:
        return out.reshape(n, c, h, w)
    return out.reshape(n, c, padded_hw)[:, :, :hw].reshape(n, c, h, w)


def _reference(img_nchw, weight, bias):
    # Pure-JAX reference of the same forward pass (original formula, NCHW).
    x = img_nchw.astype(jnp.float32)
    net = jnp.einsum("nchw,cd->ndhw", x, weight.astype(jnp.float32))
    net = net + bias.astype(jnp.float32)[None, :, None, None]
    eps = 1e-08
    q = jnp.clip(x, 0.001, 0.999) + eps
    z = -jnp.log(1.0 / q - 1.0) + net
    return jax.nn.sigmoid(z).astype(img_nchw.dtype)


if __name__ == "__main__":
    key = jax.random.PRNGKey(0)
    k_img, k_w, k_b = jax.random.split(key, 3)

    N, C, H, W = 2, 4, 16, 16
    # image values in (0, 1) like an RGB-ish input
    img = jax.random.uniform(k_img, (N, C, H, W), dtype=jnp.float32)
    # deterministic synthetic 1x1-conv network parameters
    weight = 0.1 * jax.random.normal(k_w, (C, C), dtype=jnp.float32)
    bias = 0.1 * jax.random.normal(k_b, (C,), dtype=jnp.float32)

    out = residual_generator(img, weight, bias)
    out = jax.block_until_ready(out)

    ref = _reference(img, weight, bias)
    assert out.shape == (N, C, H, W)
    assert jnp.allclose(out, ref, atol=1e-5, rtol=1e-5), "mismatch vs reference"

    print("KERNEL_OK")
</pallas_src>

<mosaic_0001>
module attributes {stable_mosaic.version = 11 : i64} {
  func.func @_residual_generator_kernel(%arg0: i32, %arg1: i32, %arg2: memref<1x4x2x128xf32, #tpu.memory_space<vmem>>, %arg3: memref<4x4xf32, #tpu.memory_space<smem>>, %arg4: memref<4xf32, #tpu.memory_space<smem>>, %arg5: memref<1x4x2x128xf32, #tpu.memory_space<vmem>>) attributes {dimension_semantics = [#tpu.dimension_semantics<parallel>, #tpu.dimension_semantics<parallel>], iteration_bounds = array<i64: 2, 1>, scalar_prefetch = 0 : i64, scratch_operands = 0 : i64, tpu.core_type = #tpu.core_type<tc>, window_params = [{transform_indices = @transform_0, window_bounds = array<i64: 1, 4, 2, 128>}, {transform_indices = @transform_1, window_bounds = array<i64: 4, 4>}, {transform_indices = @transform_2, window_bounds = array<i64: 4>}, {transform_indices = @transform_3, window_bounds = array<i64: 1, 4, 2, 128>}]} {
    %c0 = arith.constant 0 : index
    %c0_0 = arith.constant 0 : index
    %c0_1 = arith.constant 0 : index
    %c0_2 = arith.constant 0 : index
    %0 = vector.load %arg2[%c0, %c0_0, %c0_1, %c0_2] : memref<1x4x2x128xf32, #tpu.memory_space<vmem>>, vector<1x1x2x128xf32>
    %1 = vector.shape_cast %0 : vector<1x1x2x128xf32> to vector<2x128xf32>
    %c0_3 = arith.constant 0 : index
    %c0_4 = arith.constant 0 : index
    %2 = memref.load %arg3[%c0_3, %c0_4] : memref<4x4xf32, #tpu.memory_space<smem>>
    %3 = vector.broadcast %2 : f32 to vector<2x128xf32>
    %4 = arith.mulf %1, %3 : vector<2x128xf32>
    %c0_5 = arith.constant 0 : index
    %c1 = arith.constant 1 : index
    %c0_6 = arith.constant 0 : index
    %c0_7 = arith.constant 0 : index
    %5 = vector.load %arg2[%c0_5, %c1, %c0_6, %c0_7] : memref<1x4x2x128xf32, #tpu.memory_space<vmem>>, vector<1x1x2x128xf32>
    %6 = vector.shape_cast %5 : vector<1x1x2x128xf32> to vector<2x128xf32>
    %c1_8 = arith.constant 1 : index
    %c0_9 = arith.constant 0 : index
    %7 = memref.load %arg3[%c1_8, %c0_9] : memref<4x4xf32, #tpu.memory_space<smem>>
    %8 = vector.broadcast %7 : f32 to vector<2x128xf32>
    %9 = arith.mulf %6, %8 : vector<2x128xf32>
    %10 = arith.addf %4, %9 : vector<2x128xf32>
    %c0_10 = arith.constant 0 : index
    %c2 = arith.constant 2 : index
    %c0_11 = arith.constant 0 : index
    %c0_12 = arith.constant 0 : index
    %11 = vector.load %arg2[%c0_10, %c2, %c0_11, %c0_12] : memref<1x4x2x128xf32, #tpu.memory_space<vmem>>, vector<1x1x2x128xf32>
    %12 = vector.shape_cast %11 : vector<1x1x2x128xf32> to vector<2x128xf32>
    %c2_13 = arith.constant 2 : index
    %c0_14 = arith.constant 0 : index
    %13 = memref.load %arg3[%c2_13, %c0_14] : memref<4x4xf32, #tpu.memory_space<smem>>
    %14 = vector.broadcast %13 : f32 to vector<2x128xf32>
    %15 = arith.mulf %12, %14 : vector<2x128xf32>
    %16 = arith.addf %10, %15 : vector<2x128xf32>
    %c0_15 = arith.constant 0 : index
    %c3 = arith.constant 3 : index
    %c0_16 = arith.constant 0 : index
    %c0_17 = arith.constant 0 : index
    %17 = vector.load %arg2[%c0_15, %c3, %c0_16, %c0_17] : memref<1x4x2x128xf32, #tpu.memory_space<vmem>>, vector<1x1x2x128xf32>
    %18 = vector.shape_cast %17 : vector<1x1x2x128xf32> to vector<2x128xf32>
    %c3_18 = arith.constant 3 : index
    %c0_19 = arith.constant 0 : index
    %19 = memref.load %arg3[%c3_18, %c0_19] : memref<4x4xf32, #tpu.memory_space<smem>>
    %20 = vector.broadcast %19 : f32 to vector<2x128xf32>
    %21 = arith.mulf %18, %20 : vector<2x128xf32>
    %22 = arith.addf %16, %21 : vector<2x128xf32>
    %c0_20 = arith.constant 0 : index
    %23 = memref.load %arg4[%c0_20] : memref<4xf32, #tpu.memory_space<smem>>
    %24 = vector.broadcast %23 : f32 to vector<2x128xf32>
    %25 = arith.addf %22, %24 : vector<2x128xf32>
    %c0_21 = arith.constant 0 : index
    %c0_22 = arith.constant 0 : index
    %c0_23 = arith.constant 0 : index
    %c0_24 = arith.constant 0 : index
    %26 = vector.load %arg2[%c0_21, %c0_22, %c0_23, %c0_24] : memref<1x4x2x128xf32, #tpu.memory_space<vmem>>, vector<1x1x2x128xf32>
    %27 = vector.shape_cast %26 : vector<1x1x2x128xf32> to vector<2x128xf32>
    %cst = arith.constant 1.000000e-03 : f32
    %cst_25 = arith.constant 9.990000e-01 : f32
    %28 = vector.broadcast %cst : f32 to vector<2x128xf32>
    %29 = arith.maximumf %28, %27 : vector<2x128xf32>
    %30 = vector.broadcast %cst_25 : f32 to vector<2x128xf32>
    %31 = arith.minimumf %30, %29 : vector<2x128xf32>
    %cst_26 = arith.constant 9.99999993E-9 : f32
    %32 = vector.broadcast %cst_26 : f32 to vector<2x128xf32>
    %33 = arith.addf %31, %32 : vector<2x128xf32>
    %cst_27 = arith.constant 1.000000e+00 : f32
    %34 = vector.broadcast %cst_27 : f32 to vector<2x128xf32>
    %35 = arith.subf %34, %33 : vector<2x128xf32>
    %cst_28 = arith.constant 0.000000e+00 : f32
    %36 = vector.broadcast %cst_28 : f32 to vector<2x128xf32>
    %37 = arith.subf %36, %25 : vector<2x128xf32>
    %38 = math.exp %37 : vector<2x128xf32>
    %39 = arith.mulf %35, %38 : vector<2x128xf32>
    %40 = arith.addf %33, %39 : vector<2x128xf32>
    %41 = tpu.reciprocal %40 : vector<2x128xf32> -> vector<2x128xf32>
    %42 = arith.mulf %33, %41 : vector<2x128xf32>
    %c0_29 = arith.constant 0 : index
    %c0_30 = arith.constant 0 : index
    %c0_31 = arith.constant 0 : index
    %c0_32 = arith.constant 0 : index
    %43 = vector.load %arg5[%c0_29, %c0_30, %c0_31, %c0_32] : memref<1x4x2x128xf32, #tpu.memory_space<vmem>>, vector<1x1x2x128xf32>
    %44 = vector.shape_cast %43 : vector<1x1x2x128xf32> to vector<2x128xf32>
    %45 = vector.shape_cast %42 : vector<2x128xf32> to vector<1x1x2x128xf32>
    tpu.vector_store %arg5[%c0_29, %c0_30, %c0_31, %c0_32], %45 {strides = array<i32>} : memref<1x4x2x128xf32, #tpu.memory_space<vmem>>, vector<1x1x2x128xf32>,
    %c0_33 = arith.constant 0 : index
    %c0_34 = arith.constant 0 : index
    %c0_35 = arith.constant 0 : index
    %c0_36 = arith.constant 0 : index
    %46 = vector.load %arg2[%c0_33, %c0_34, %c0_35, %c0_36] : memref<1x4x2x128xf32, #tpu.memory_space<vmem>>, vector<1x1x2x128xf32>
    %47 = vector.shape_cast %46 : vector<1x1x2x128xf32> to vector<2x128xf32>
    %c0_37 = arith.constant 0 : index
    %c1_38 = arith.constant 1 : index
    %48 = memref.load %arg3[%c0_37, %c1_38] : memref<4x4xf32, #tpu.memory_space<smem>>
    %49 = vector.broadcast %48 : f32 to vector<2x128xf32>
    %50 = arith.mulf %47, %49 : vector<2x128xf32>
    %c0_39 = arith.constant 0 : index
    %c1_40 = arith.constant 1 : index
    %c0_41 = arith.constant 0 : index
    %c0_42 = arith.constant 0 : index
    %51 = vector.load %arg2[%c0_39, %c1_40, %c0_41, %c0_42] : memref<1x4x2x128xf32, #tpu.memory_space<vmem>>, vector<1x1x2x128xf32>
    %52 = vector.shape_cast %51 : vector<1x1x2x128xf32> to vector<2x128xf32>
    %c1_43 = arith.constant 1 : index
    %c1_44 = arith.constant 1 : index
    %53 = memref.load %arg3[%c1_43, %c1_44] : memref<4x4xf32, #tpu.memory_space<smem>>
    %54 = vector.broadcast %53 : f32 to vector<2x128xf32>
    %55 = arith.mulf %52, %54 : vector<2x128xf32>
    %56 = arith.addf %50, %55 : vector<2x128xf32>
    %c0_45 = arith.constant 0 : index
    %c2_46 = arith.constant 2 : index
    %c0_47 = arith.constant 0 : index
    %c0_48 = arith.constant 0 : index
    %57 = vector.load %arg2[%c0_45, %c2_46, %c0_47, %c0_48] : memref<1x4x2x128xf32, #tpu.memory_space<vmem>>, vector<1x1x2x128xf32>
    %58 = vector.shape_cast %57 : vector<1x1x2x128xf32> to vector<2x128xf32>
    %c2_49 = arith.constant 2 : index
    %c1_50 = arith.constant 1 : index
    %59 = memref.load %arg3[%c2_49, %c1_50] : memref<4x4xf32, #tpu.memory_space<smem>>
    %60 = vector.broadcast %59 : f32 to vector<2x128xf32>
    %61 = arith.mulf %58, %60 : vector<2x128xf32>
    %62 = arith.addf %56, %61 : vector<2x128xf32>
    %c0_51 = arith.constant 0 : index
    %c3_52 = arith.constant 3 : index
    %c0_53 = arith.constant 0 : index
    %c0_54 = arith.constant 0 : index
    %63 = vector.load %arg2[%c0_51, %c3_52, %c0_53, %c0_54] : memref<1x4x2x128xf32, #tpu.memory_space<vmem>>, vector<1x1x2x128xf32>
    %64 = vector.shape_cast %63 : vector<1x1x2x128xf32> to vector<2x128xf32>
    %c3_55 = arith.constant 3 : index
    %c1_56 = arith.constant 1 : index
    %65 = memref.load %arg3[%c3_55, %c1_56] : memref<4x4xf32, #tpu.memory_space<smem>>
    %66 = vector.broadcast %65 : f32 to vector<2x128xf32>
    %67 = arith.mulf %64, %66 : vector<2x128xf32>
    %68 = arith.addf %62, %67 : vector<2x128xf32>
    %c1_57 = arith.constant 1 : index
    %69 = memref.load %arg4[%c1_57] : memref<4xf32, #tpu.memory_space<smem>>
    %70 = vector.broadcast %69 : f32 to vector<2x128xf32>
    %71 = arith.addf %68, %70 : vector<2x128xf32>
    %c0_58 = arith.constant 0 : index
    %c1_59 = arith.constant 1 : index
    %c0_60 = arith.constant 0 : index
    %c0_61 = arith.constant 0 : index
    %72 = vector.load %arg2[%c0_58, %c1_59, %c0_60, %c0_61] : memref<1x4x2x128xf32, #tpu.memory_space<vmem>>, vector<1x1x2x128xf32>
    %73 = vector.shape_cast %72 : vector<1x1x2x128xf32> to vector<2x128xf32>
    %cst_62 = arith.constant 1.000000e-03 : f32
    %cst_63 = arith.constant 9.990000e-01 : f32
    %74 = vector.broadcast %cst_62 : f32 to vector<2x128xf32>
    %75 = arith.maximumf %74, %73 : vector<2x128xf32>
    %76 = vector.broadcast %cst_63 : f32 to vector<2x128xf32>
    %77 = arith.minimumf %76, %75 : vector<2x128xf32>
    %cst_64 = arith.constant 9.99999993E-9 : f32
    %78 = vector.broadcast %cst_64 : f32 to vector<2x128xf32>
    %79 = arith.addf %77, %78 : vector<2x128xf32>
    %cst_65 = arith.constant 1.000000e+00 : f32
    %80 = vector.broadcast %cst_65 : f32 to vector<2x128xf32>
    %81 = arith.subf %80, %79 : vector<2x128xf32>
    %cst_66 = arith.constant 0.000000e+00 : f32
    %82 = vector.broadcast %cst_66 : f32 to vector<2x128xf32>
    %83 = arith.subf %82, %71 : vector<2x128xf32>
    %84 = math.exp %83 : vector<2x128xf32>
    %85 = arith.mulf %81, %84 : vector<2x128xf32>
    %86 = arith.addf %79, %85 : vector<2x128xf32>
    %87 = tpu.reciprocal %86 : vector<2x128xf32> -> vector<2x128xf32>
    %88 = arith.mulf %79, %87 : vector<2x128xf32>
    %c0_67 = arith.constant 0 : index
    %c1_68 = arith.constant 1 : index
    %c0_69 = arith.constant 0 : index
    %c0_70 = arith.constant 0 : index
    %89 = vector.load %arg5[%c0_67, %c1_68, %c0_69, %c0_70] : memref<1x4x2x128xf32, #tpu.memory_space<vmem>>, vector<1x1x2x128xf32>
    %90 = vector.shape_cast %89 : vector<1x1x2x128xf32> to vector<2x128xf32>
    %91 = vector.shape_cast %88 : vector<2x128xf32> to vector<1x1x2x128xf32>
    tpu.vector_store %arg5[%c0_67, %c1_68, %c0_69, %c0_70], %91 {strides = array<i32>} : memref<1x4x2x128xf32, #tpu.memory_space<vmem>>, vector<1x1x2x128xf32>,
    %c0_71 = arith.constant 0 : index
    %c0_72 = arith.constant 0 : index
    %c0_73 = arith.constant 0 : index
    %c0_74 = arith.constant 0 : index
    %92 = vector.load %arg2[%c0_71, %c0_72, %c0_73, %c0_74] : memref<1x4x2x128xf32, #tpu.memory_space<vmem>>, vector<1x1x2x128xf32>
    %93 = vector.shape_cast %92 : vector<1x1x2x128xf32> to vector<2x128xf32>
    %c0_75 = arith.constant 0 : index
    %c2_76 = arith.constant 2 : index
    %94 = memref.load %arg3[%c0_75, %c2_76] : memref<4x4xf32, #tpu.memory_space<smem>>
    %95 = vector.broadcast %94 : f32 to vector<2x128xf32>
    %96 = arith.mulf %93, %95 : vector<2x128xf32>
    %c0_77 = arith.constant 0 : index
    %c1_78 = arith.constant 1 : index
    %c0_79 = arith.constant 0 : index
    %c0_80 = arith.constant 0 : index
    %97 = vector.load %arg2[%c0_77, %c1_78, %c0_79, %c0_80] : memref<1x4x2x128xf32, #tpu.memory_space<vmem>>, vector<1x1x2x128xf32>
    %98 = vector.shape_cast %97 : vector<1x1x2x128xf32> to vector<2x128xf32>
    %c1_81 = arith.constant 1 : index
    %c2_82 = arith.constant 2 : index
    %99 = memref.load %arg3[%c1_81, %c2_82] : memref<4x4xf32, #tpu.memory_space<smem>>
    %100 = vector.broadcast %99 : f32 to vector<2x128xf32>
    %101 = arith.mulf %98, %100 : vector<2x128xf32>
    %102 = arith.addf %96, %101 : vector<2x128xf32>
    %c0_83 = arith.constant 0 : index
    %c2_84 = arith.constant 2 : index
    %c0_85 = arith.constant 0 : index
    %c0_86 = arith.constant 0 : index
    %103 = vector.load %arg2[%c0_83, %c2_84, %c0_85, %c0_86] : memref<1x4x2x128xf32, #tpu.memory_space<vmem>>, vector<1x1x2x128xf32>
    %104 = vector.shape_cast %103 : vector<1x1x2x128xf32> to vector<2x128xf32>
    %c2_87 = arith.constant 2 : index
    %c2_88 = arith.constant 2 : index
    %105 = memref.load %arg3[%c2_87, %c2_88] : memref<4x4xf32, #tpu.memory_space<smem>>
    %106 = vector.broadcast %105 : f32 to vector<2x128xf32>
    %107 = arith.mulf %104, %106 : vector<2x128xf32>
    %108 = arith.addf %102, %107 : vector<2x128xf32>
    %c0_89 = arith.constant 0 : index
    %c3_90 = arith.constant 3 : index
    %c0_91 = arith.constant 0 : index
    %c0_92 = arith.constant 0 : index
    %109 = vector.load %arg2[%c0_89, %c3_90, %c0_91, %c0_92] : memref<1x4x2x128xf32, #tpu.memory_space<vmem>>, vector<1x1x2x128xf32>
    %110 = vector.shape_cast %109 : vector<1x1x2x128xf32> to vector<2x128xf32>
    %c3_93 = arith.constant 3 : index
    %c2_94 = arith.constant 2 : index
    %111 = memref.load %arg3[%c3_93, %c2_94] : memref<4x4xf32, #tpu.memory_space<smem>>
    %112 = vector.broadcast %111 : f32 to vector<2x128xf32>
    %113 = arith.mulf %110, %112 : vector<2x128xf32>
    %114 = arith.addf %108, %113 : vector<2x128xf32>
    %c2_95 = arith.constant 2 : index
    %115 = memref.load %arg4[%c2_95] : memref<4xf32, #tpu.memory_space<smem>>
    %116 = vector.broadcast %115 : f32 to vector<2x128xf32>
    %117 = arith.addf %114, %116 : vector<2x128xf32>
    %c0_96 = arith.constant 0 : index
    %c2_97 = arith.constant 2 : index
    %c0_98 = arith.constant 0 : index
    %c0_99 = arith.constant 0 : index
    %118 = vector.load %arg2[%c0_96, %c2_97, %c0_98, %c0_99] : memref<1x4x2x128xf32, #tpu.memory_space<vmem>>, vector<1x1x2x128xf32>
    %119 = vector.shape_cast %118 : vector<1x1x2x128xf32> to vector<2x128xf32>
    %cst_100 = arith.constant 1.000000e-03 : f32
    %cst_101 = arith.constant 9.990000e-01 : f32
    %120 = vector.broadcast %cst_100 : f32 to vector<2x128xf32>
    %121 = arith.maximumf %120, %119 : vector<2x128xf32>
    %122 = vector.broadcast %cst_101 : f32 to vector<2x128xf32>
    %123 = arith.minimumf %122, %121 : vector<2x128xf32>
    %cst_102 = arith.constant 9.99999993E-9 : f32
    %124 = vector.broadcast %cst_102 : f32 to vector<2x128xf32>
    %125 = arith.addf %123, %124 : vector<2x128xf32>
    %cst_103 = arith.constant 1.000000e+00 : f32
    %126 = vector.broadcast %cst_103 : f32 to vector<2x128xf32>
    %127 = arith.subf %126, %125 : vector<2x128xf32>
    %cst_104 = arith.constant 0.000000e+00 : f32
    %128 = vector.broadcast %cst_104 : f32 to vector<2x128xf32>
    %129 = arith.subf %128, %117 : vector<2x128xf32>
    %130 = math.exp %129 : vector<2x128xf32>
    %131 = arith.mulf %127, %130 : vector<2x128xf32>
    %132 = arith.addf %125, %131 : vector<2x128xf32>
    %133 = tpu.reciprocal %132 : vector<2x128xf32> -> vector<2x128xf32>
    %134 = arith.mulf %125, %133 : vector<2x128xf32>
    %c0_105 = arith.constant 0 : index
    %c2_106 = arith.constant 2 : index
    %c0_107 = arith.constant 0 : index
    %c0_108 = arith.constant 0 : index
    %135 = vector.load %arg5[%c0_105, %c2_106, %c0_107, %c0_108] : memref<1x4x2x128xf32, #tpu.memory_space<vmem>>, vector<1x1x2x128xf32>
    %136 = vector.shape_cast %135 : vector<1x1x2x128xf32> to vector<2x128xf32>
    %137 = vector.shape_cast %134 : vector<2x128xf32> to vector<1x1x2x128xf32>
    tpu.vector_store %arg5[%c0_105, %c2_106, %c0_107, %c0_108], %137 {strides = array<i32>} : memref<1x4x2x128xf32, #tpu.memory_space<vmem>>, vector<1x1x2x128xf32>,
    %c0_109 = arith.constant 0 : index
    %c0_110 = arith.constant 0 : index
    %c0_111 = arith.constant 0 : index
    %c0_112 = arith.constant 0 : index
    %138 = vector.load %arg2[%c0_109, %c0_110, %c0_111, %c0_112] : memref<1x4x2x128xf32, #tpu.memory_space<vmem>>, vector<1x1x2x128xf32>
    %139 = vector.shape_cast %138 : vector<1x1x2x128xf32> to vector<2x128xf32>
    %c0_113 = arith.constant 0 : index
    %c3_114 = arith.constant 3 : index
    %140 = memref.load %arg3[%c0_113, %c3_114] : memref<4x4xf32, #tpu.memory_space<smem>>
    %141 = vector.broadcast %140 : f32 to vector<2x128xf32>
    %142 = arith.mulf %139, %141 : vector<2x128xf32>
    %c0_115 = arith.constant 0 : index
    %c1_116 = arith.constant 1 : index
    %c0_117 = arith.constant 0 : index
    %c0_118 = arith.constant 0 : index
    %143 = vector.load %arg2[%c0_115, %c1_116, %c0_117, %c0_118] : memref<1x4x2x128xf32, #tpu.memory_space<vmem>>, vector<1x1x2x128xf32>
    %144 = vector.shape_cast %143 : vector<1x1x2x128xf32> to vector<2x128xf32>
    %c1_119 = arith.constant 1 : index
    %c3_120 = arith.constant 3 : index
    %145 = memref.load %arg3[%c1_119, %c3_120] : memref<4x4xf32, #tpu.memory_space<smem>>
    %146 = vector.broadcast %145 : f32 to vector<2x128xf32>
    %147 = arith.mulf %144, %146 : vector<2x128xf32>
    %148 = arith.addf %142, %147 : vector<2x128xf32>
    %c0_121 = arith.constant 0 : index
    %c2_122 = arith.constant 2 : index
    %c0_123 = arith.constant 0 : index
    %c0_124 = arith.constant 0 : index
    %149 = vector.load %arg2[%c0_121, %c2_122, %c0_123, %c0_124] : memref<1x4x2x128xf32, #tpu.memory_space<vmem>>, vector<1x1x2x128xf32>
    %150 = vector.shape_cast %149 : vector<1x1x2x128xf32> to vector<2x128xf32>
    %c2_125 = arith.constant 2 : index
    %c3_126 = arith.constant 3 : index
    %151 = memref.load %arg3[%c2_125, %c3_126] : memref<4x4xf32, #tpu.memory_space<smem>>
    %152 = vector.broadcast %151 : f32 to vector<2x128xf32>
    %153 = arith.mulf %150, %152 : vector<2x128xf32>
    %154 = arith.addf %148, %153 : vector<2x128xf32>
    %c0_127 = arith.constant 0 : index
    %c3_128 = arith.constant 3 : index
    %c0_129 = arith.constant 0 : index
    %c0_130 = arith.constant 0 : index
    %155 = vector.load %arg2[%c0_127, %c3_128, %c0_129, %c0_130] : memref<1x4x2x128xf32, #tpu.memory_space<vmem>>, vector<1x1x2x128xf32>
    %156 = vector.shape_cast %155 : vector<1x1x2x128xf32> to vector<2x128xf32>
    %c3_131 = arith.constant 3 : index
    %c3_132 = arith.constant 3 : index
    %157 = memref.load %arg3[%c3_131, %c3_132] : memref<4x4xf32, #tpu.memory_space<smem>>
    %158 = vector.broadcast %157 : f32 to vector<2x128xf32>
    %159 = arith.mulf %156, %158 : vector<2x128xf32>
    %160 = arith.addf %154, %159 : vector<2x128xf32>
    %c3_133 = arith.constant 3 : index
    %161 = memref.load %arg4[%c3_133] : memref<4xf32, #tpu.memory_space<smem>>
    %162 = vector.broadcast %161 : f32 to vector<2x128xf32>
    %163 = arith.addf %160, %162 : vector<2x128xf32>
    %c0_134 = arith.constant 0 : index
    %c3_135 = arith.constant 3 : index
    %c0_136 = arith.constant 0 : index
    %c0_137 = arith.constant 0 : index
    %164 = vector.load %arg2[%c0_134, %c3_135, %c0_136, %c0_137] : memref<1x4x2x128xf32, #tpu.memory_space<vmem>>, vector<1x1x2x128xf32>
    %165 = vector.shape_cast %164 : vector<1x1x2x128xf32> to vector<2x128xf32>
    %cst_138 = arith.constant 1.000000e-03 : f32
    %cst_139 = arith.constant 9.990000e-01 : f32
    %166 = vector.broadcast %cst_138 : f32 to vector<2x128xf32>
    %167 = arith.maximumf %166, %165 : vector<2x128xf32>
    %168 = vector.broadcast %cst_139 : f32 to vector<2x128xf32>
    %169 = arith.minimumf %168, %167 : vector<2x128xf32>
    %cst_140 = arith.constant 9.99999993E-9 : f32
    %170 = vector.broadcast %cst_140 : f32 to vector<2x128xf32>
    %171 = arith.addf %169, %170 : vector<2x128xf32>
    %cst_141 = arith.constant 1.000000e+00 : f32
    %172 = vector.broadcast %cst_141 : f32 to vector<2x128xf32>
    %173 = arith.subf %172, %171 : vector<2x128xf32>
    %cst_142 = arith.constant 0.000000e+00 : f32
    %174 = vector.broadcast %cst_142 : f32 to vector<2x128xf32>
    %175 = arith.subf %174, %163 : vector<2x128xf32>
    %176 = math.exp %175 : vector<2x128xf32>
    %177 = arith.mulf %173, %176 : vector<2x128xf32>
    %178 = arith.addf %171, %177 : vector<2x128xf32>
    %179 = tpu.reciprocal %178 : vector<2x128xf32> -> vector<2x128xf32>
    %180 = arith.mulf %171, %179 : vector<2x128xf32>
    %c0_143 = arith.constant 0 : index
    %c3_144 = arith.constant 3 : index
    %c0_145 = arith.constant 0 : index
    %c0_146 = arith.constant 0 : index
    %181 = vector.load %arg5[%c0_143, %c3_144, %c0_145, %c0_146] : memref<1x4x2x128xf32, #tpu.memory_space<vmem>>, vector<1x1x2x128xf32>
    %182 = vector.shape_cast %181 : vector<1x1x2x128xf32> to vector<2x128xf32>
    %183 = vector.shape_cast %180 : vector<2x128xf32> to vector<1x1x2x128xf32>
    tpu.vector_store %arg5[%c0_143, %c3_144, %c0_145, %c0_146], %183 {strides = array<i32>} : memref<1x4x2x128xf32, #tpu.memory_space<vmem>>, vector<1x1x2x128xf32>,
    return
  }
  func.func @transform_0(%arg0: i32, %arg1: i32) -> (i32, i32, i32, i32) {
    %c0_i32 = arith.constant 0 : i32
    %c0_i32_0 = arith.constant 0 : i32
    %c0_i32_1 = arith.constant 0 : i32
    return %arg0, %c0_i32, %arg1, %c0_i32_0 : i32, i32, i32, i32
  }
  func.func @transform_1(%arg0: i32, %arg1: i32) -> (i32, i32) {
    %c0_i32 = arith.constant 0 : i32
    %c0_i32_0 = arith.constant 0 : i32
    %c0_i32_1 = arith.constant 0 : i32
    return %c0_i32, %c0_i32_0 : i32, i32
  }
  func.func @transform_2(%arg0: i32, %arg1: i32) -> i32 {
    %c0_i32 = arith.constant 0 : i32
    %c0_i32_0 = arith.constant 0 : i32
    return %c0_i32 : i32
  }
  func.func @transform_3(%arg0: i32, %arg1: i32) -> (i32, i32, i32, i32) {
    %c0_i32 = arith.constant 0 : i32
    %c0_i32_0 = arith.constant 0 : i32
    %c0_i32_1 = arith.constant 0 : i32
    return %arg0, %c0_i32, %arg1, %c0_i32_0 : i32, i32, i32, i32
  }
}

</mosaic_0001>

<llo_original>
// kernel: tpu_custom_call.1
$region0: #{tpu_custom_call.1}
  #allocation0 [shape = 'u32[]', space=smem, size = 0x4, offset = 0x4, fixed_abs, tag = 'smem constant byte address 0x4 - core index']
  #allocation1 [shape = 'u32[144,128]{1,0:T(1,128)}', space=vmem, size = 0x12000, scoped, tag = 'internal scratch']
  %s0 = inlined_call_operand.hbm [shape: f32[2,4,2,128], index: 0, kind: input, shape index: {}]
  %s1 = inlined_call_operand.hbm [shape: f32[4,4], index: 1, kind: input, shape index: {}]
  %s2 = inlined_call_operand.vmem [shape: f32[4], index: 2, kind: input, shape index: {}]
  %s3 = inlined_call_operand.hbm [shape: f32[2,4,2,128], index: 3, kind: output, shape index: {}]
  %s4 = sld [smem:[#allocation0]]
  $region57: #{tpu_custom_call.1} parent=0
    _
  %s6 = ssub.s32 1, %s4
  %s7 = scalar_select 0, %s6, %s4
  $region1: #{tpu_custom_call.1} parent=0
    #allocation2 [shape = 'u8[8192]{0}', space=vmem, size = 0x2000, scoped, tag = 'input window, operand 0']
    #allocation3 [shape = 's32[2]{0}', space=sflag, size = 0x8, scoped, tag = 'scoped memory for tpu_custom_call.1']
    #allocation4 [shape = 's32[2]{0}', space=sflag, size = 0x8, scoped, tag = 'scoped memory for tpu_custom_call.1']
    #allocation5 [shape = 's32[2]{0}', space=sflag, size = 0x8, scoped, tag = 'scoped memory for tpu_custom_call.1']
    #allocation6 [shape = 's32[2]{0}', space=sflag, size = 0x8, scoped, tag = 'scoped memory for tpu_custom_call.1']
    #allocation7 [shape = 'u8[2048]{0}', space=smem, size = 0x800, scoped, tag = 'input window, operand 1, single buffered']
    #allocation8 [shape = 'u8[512]{0}', space=smem, size = 0x200, scoped, tag = 'input window, operand 2, single buffered']
    #allocation9 [shape = 'u8[8192]{0}', space=vmem, size = 0x2000, scoped, tag = 'output window, operand 0']
    %8 = vsyncpa [#allocation3], 0
    %s9 = scalar_lea.sflag [#allocation3], 1
    %10 = vsyncpa %s9, 0
    %11 = vsyncpa [#allocation5], 0
    %12 = vsyncpa [#allocation6], 0
    %13 = vsyncpa [#allocation4], 0
    %s14 = scalar_lea.sflag [#allocation4], 1
    %15 = vsyncpa %s14, 0
    loop: start=0, step=1, limit=4
    $region2: #{tpu_custom_call.1} parent=1 // loop_pre_header
      _
    $region3: #{tpu_custom_call.1} parent=1 // loop_header
      %s17 = sphi 0, %s21
      %p18 = scmp.ge.s32.totalorder %s17, 4
      %s24 = sphi 0, %s36
      %s25 = sphi 0, %s32
      %s26 = sphi 0, %s24
      %s27 = sphi 0, %s25
      %s28 = sphi 0, %s26
      %s29 = sphi 0, %s27
      %s41 = sphi 0, %s43
      %s44 = sphi 0, %s41
      %s45 = sphi 0, %s44
      %s61 = sphi 0, %s45
      %s65 = sphi 0, %s65
      %s67 = sphi 0, %s65
      %s68 = sphi 0, %s67
      %s82 = sphi 0, %s68
      %s86 = sphi 0, %s86
      %s88 = sphi 0, %s86
      %s89 = sphi 0, %s88
      %s103 = sphi 0, %s89
      %s111 = sphi 0, %s113
      %s114 = sphi 0, %s111
      %s115 = sphi 0, %s114
      %s131 = sphi 0, %s115
    $region4: #{tpu_custom_call.1} parent=1 // loop_header_branch
      %20 = sbr.rel (%p18) target = $region8
    $region5: #{tpu_custom_call.1} parent=1 // loop_body
      %s22 = ssub.s32 %s17, 1
      %s23 = ssub.s32 %s17, 2
      %s30 = sadd.s32 1, %s25
      %p31 = scmp.ge.s32.totalorder %s30, 1
      %s32 = scalar_select %p31, 0, %s30
      %s33 = sadd.s32 1, %s24
      %s34 = scalar_select %p31, %s33, %s24
      %p35 = scmp.ge.s32.totalorder %s34, 2
      %s36 = scalar_select %p35, 0, %s34
      %s37 = ssub.s32 %s24, %s36
      %s38 = ssub.s32 %s25, %s32
      %s39 = sor.u32 %s37, %s38
      %p40 = scmp.eq.s32.totalorder %s39, 0
      %s42 = sadd.s32 %s41, 1
      %s43 = scalar_select %p40, %s41, %s42
      %p46 = pneg %p40
      %p47 = scmp.eq.s32.totalorder %s17, 1
      %p48 = por %p46, %p47
      %p49 = scmp.ne.s32.totalorder %s41, %s44
      %p50 = scmp.eq.s32.totalorder %s17, 0
      %p51 = por %p49, %p50
      %p52 = scmp.ne.s32.totalorder %s41, %s44
      %p53 = scmp.eq.s32.totalorder %s22, 1
      %p54 = por %p52, %p53
      %p55 = scmp.ne.s32.totalorder %s44, %s45
      %p56 = scmp.eq.s32.totalorder %s22, 0
      %p57 = por %p55, %p56
      %p58 = scmp.ne.s32.totalorder %s44, %s45
      %p59 = scmp.eq.s32.totalorder %s23, 1
      %p60 = por %p58, %p59
      %p62 = scmp.ne.s32.totalorder %s45, %s61
      %p63 = scmp.eq.s32.totalorder %s23, 0
      %p64 = por %p62, %p63
      %s66 = sadd.s32 %s65, 1
      %p69 = scmp.eq.s32.totalorder %s17, 1
      %p70 = scmp.ne.s32.totalorder %s65, %s67
      %p71 = scmp.eq.s32.totalorder %s17, 0
      %p72 = por %p70, %p71
      %p73 = scmp.ne.s32.totalorder %s65, %s67
      %p74 = scmp.eq.s32.totalorder %s22, 1
      %p75 = por %p73, %p74
      %p76 = scmp.ne.s32.totalorder %s67, %s68
      %p77 = scmp.eq.s32.totalorder %s22, 0
      %p78 = por %p76, %p77
      %p79 = scmp.ne.s32.totalorder %s67, %s68
      %p80 = scmp.eq.s32.totalorder %s23, 1
      %p81 = por %p79, %p80
      %p83 = scmp.ne.s32.totalorder %s68, %s82
      %p84 = scmp.eq.s32.totalorder %s23, 0
      %p85 = por %p83, %p84
      %s87 = sadd.s32 %s86, 1
      %p90 = scmp.eq.s32.totalorder %s17, 1
      %p91 = scmp.ne.s32.totalorder %s86, %s88
      %p92 = scmp.eq.s32.totalorder %s17, 0
      %p93 = por %p91, %p92
      %p94 = scmp.ne.s32.totalorder %s86, %s88
      %p95 = scmp.eq.s32.totalorder %s22, 1
      %p96 = por %p94, %p95
      %p97 = scmp.ne.s32.totalorder %s88, %s89
      %p98 = scmp.eq.s32.totalorder %s22, 0
      %p99 = por %p97, %p98
      %p100 = scmp.ne.s32.totalorder %s88, %s89
      %p101 = scmp.eq.s32.totalorder %s23, 1
      %p102 = por %p100, %p101
      %p104 = scmp.ne.s32.totalorder %s89, %s103
      %p105 = scmp.eq.s32.totalorder %s23, 0
      %p106 = por %p104, %p105
      %s107 = ssub.s32 %s24, %s36
      %s108 = ssub.s32 %s25, %s32
      %s109 = sor.u32 %s107, %s108
      %p110 = scmp.eq.s32.totalorder %s109, 0
      %s112 = sadd.s32 %s111, 1
      %s113 = scalar_select %p110, %s111, %s112
      %p116 = pneg %p110
      %p117 = scmp.eq.s32.totalorder %s17, 1
      %p118 = por %p116, %p117
      %p119 = scmp.ne.s32.totalorder %s111, %s114
      %p120 = scmp.eq.s32.totalorder %s17, 0
      %p121 = por %p119, %p120
      %p122 = scmp.ne.s32.totalorder %s111, %s114
      %p123 = scmp.eq.s32.totalorder %s22, 1
      %p124 = por %p122, %p123
      %p125 = scmp.ne.s32.totalorder %s114, %s115
      %p126 = scmp.eq.s32.totalorder %s22, 0
      %p127 = por %p125, %p126
      %p128 = scmp.ne.s32.totalorder %s114, %s115
      %p129 = scmp.eq.s32.totalorder %s23, 1
      %p130 = por %p128, %p129
      %p132 = scmp.ne.s32.totalorder %s115, %s131
      %p133 = scmp.eq.s32.totalorder %s23, 0
      %p134 = por %p132, %p133
      %p135 = scmp.le.s32.totalorder 1, %s17
      %p136 = scmp.lt.s32.totalorder %s17, 3
      %p137 = pnand %p135, %p136
      %p138 = pneg %p137
      // Predicated region
      $region9: #{tpu_custom_call.1} parent=5 // pred_check
        _
      $region10: #{tpu_custom_call.1} parent=5 // pred_check_branch
        %140 = sbr.rel (%p137) target = $region12
      $region11: #{tpu_custom_call.1} parent=5 // pred_region
        %s141 = ssub.s32 %s17, 1
        // Predicated region
        $region13: #{tpu_custom_call.1} parent=11 // pred_check
          %p142 = pneg %p78
        $region14: #{tpu_custom_call.1} parent=11 // pred_check_branch
          %144 = sbr.rel (%p142) target = $region16
        $region15: #{tpu_custom_call.1} parent=11 // pred_region
          %s146 = ssub.s32 64, 64
          %147 = vsyncadd [#allocation5], %s146
          %150 = dma.hbm_to_smem %s1, 64, [#allocation7], [#allocation5]
        $region16: #{tpu_custom_call.1} parent=11 // pred_fallthru
          _
        // Predicated region
        $region17: #{tpu_custom_call.1} parent=11 // pred_check
          %p151 = pneg %p99
        $region18: #{tpu_custom_call.1} parent=11 // pred_check_branch
          %153 = sbr.rel (%p151) target = $region20
        $region19: #{tpu_custom_call.1} parent=11 // pred_region
          %s155 = ssub.s32 16, 16
          %156 = vsyncadd [#allocation6], %s155
          %s158 = sshll.u32 %s2, 4
          %s159 = int_to_ptr.vmem [resolvable:$true] %s158
          %161 = dma.vmem_to_smem %s159, 16, [#allocation8], [#allocation6]
        $region20: #{tpu_custom_call.1} parent=11 // pred_fallthru
          _
      $region12: #{tpu_custom_call.1} parent=5 // pred_fallthru
        _
      %p162 = scmp.lt.s32.totalorder %s17, 2
      // Predicated region
      $region21: #{tpu_custom_call.1} parent=5 // pred_check
        %p163 = pneg %p162
      $region22: #{tpu_custom_call.1} parent=5 // pred_check_branch
        %165 = sbr.rel (%p163) target = $region24
      $region23: #{tpu_custom_call.1} parent=5 // pred_region
        // Predicated region
        $region25: #{tpu_custom_call.1} parent=23 // pred_check
          %p166 = pneg %p51
        $region26: #{tpu_custom_call.1} parent=23 // pred_check_branch
          %168 = sbr.rel (%p166) target = $region28
        $region27: #{tpu_custom_call.1} parent=23 // pred_region
          %s169 = sand.u32 %s41, 1
          %s170 = scalar_lea.sflag [#allocation3], %s169
          %s171 = sand.u32 %s41, 1
          %s172 = smul.addr %s171, 8
          %s173 = scalar_lea.vmem [#allocation2], %s172
          %s175 = ssub.s32 128, 128
          %176 = vsyncadd %s170, %s175
          %s177 = smul.addr %s24, 4
          %s178 = sadd.s32 %s25, %s177
          %s179 = smul.addr %s178, 32
          %s180 = scalar_lea.hbm %s0, %s179
          %s181 = sshll.u32 %s173, 4
          %s182 = int_to_ptr.vmem [resolvable:$true] %s181
          %187 = dma.hbm_to_vmem [thread:$0]  %s180, 128, %s182, %s170, 32, 32, 2
        $region28: #{tpu_custom_call.1} parent=23 // pred_fallthru
          _
      $region24: #{tpu_custom_call.1} parent=5 // pred_fallthru
        _
      %p188 = scmp.le.s32.totalorder 1, %s17
      %p189 = scmp.lt.s32.totalorder %s17, 3
      %p190 = pnand %p188, %p189
      %p191 = pneg %p190
      // Predicated region
      $region29: #{tpu_custom_call.1} parent=5 // pred_check
        _
      $region30: #{tpu_custom_call.1} parent=5 // pred_check_branch
        %193 = sbr.rel (%p190) target = $region32
      $region31: #{tpu_custom_call.1} parent=5 // pred_region
        %s194 = ssub.s32 %s17, 1
        %s195 = sand.u32 %s44, 1
        %s196 = scalar_lea.sflag [#allocation3], %s195
        %s197 = sand.u32 %s44, 1
        %s198 = smul.addr %s197, 8
        %s199 = scalar_lea.vmem [#allocation2], %s198
        // Predicated region
        $region33: #{tpu_custom_call.1} parent=31 // pred_check
          %p200 = pneg %p57
        $region34: #{tpu_custom_call.1} parent=31 // pred_check_branch
          %202 = sbr.rel (%p200) target = $region36
        $region35: #{tpu_custom_call.1} parent=31 // pred_region
          %203 = dma.done %s196, 128
        $region36: #{tpu_custom_call.1} parent=31 // pred_fallthru
          _
        // Predicated region
        $region37: #{tpu_custom_call.1} parent=31 // pred_check
          %p204 = pneg %p78
        $region38: #{tpu_custom_call.1} parent=31 // pred_check_branch
          %206 = sbr.rel (%p204) target = $region40
        $region39: #{tpu_custom_call.1} parent=31 // pred_region
          %207 = dma.done [#allocation5], 64
        $region40: #{tpu_custom_call.1} parent=31 // pred_fallthru
          _
        // Predicated region
        $region41: #{tpu_custom_call.1} parent=31 // pred_check
          %p208 = pneg %p99
        $region42: #{tpu_custom_call.1} parent=31 // pred_check_branch
          %210 = sbr.rel (%p208) target = $region44
        $region43: #{tpu_custom_call.1} parent=31 // pred_region
          %211 = dma.done [#allocation6], 16
        $region44: #{tpu_custom_call.1} parent=31 // pred_fallthru
          _
        %212 = sfence
        %s213 = sand.u32 %s44, 1
        %s214 = scalar_lea.sflag [#allocation3], %s213
        %s215 = sand.u32 %s44, 1
        %s216 = smul.addr %s215, 8
        %s217 = scalar_lea.vmem [#allocation2], %s216
        %p218 = pneg %p57
        %p219 = pneg %p54
        %p220 = pneg %p78
        %p221 = pneg %p75
        %p222 = pneg %p99
        %p223 = pneg %p96
        %p224 = pneg %p127
        %p225 = pneg %p124
        %s226 = sand.u32 %s114, 1
        %s227 = scalar_lea.sflag [#allocation4], %s226
        %s228 = sand.u32 %s114, 1
        %s229 = smul.addr %s228, 8
        %s230 = scalar_lea.vmem [#allocation9], %s229
        %v231 = vld [vmem:[%s199] sm:$0x3]
        %s232 = sld [smem:[#allocation7]]
        %v233 = vstv %s232
        %v234 = vmul.f32 %v231, %v233
        %s235 = scalar_lea.vmem %s199, 2 [#allocation2]
        %v236 = vld [vmem:[%s235] sm:$0x3]
        %s237 = sld [smem:[#allocation7 + $0x80]]
        %v238 = vstv %s237
        %v239 = vmul.f32 %v236, %v238
        %v240 = vadd.f32 %v234, %v239
        %s241 = scalar_lea.vmem %s199, 4 [#allocation2]
        %v242 = vld [vmem:[%s241] sm:$0x3]
        %s243 = sld [smem:[#allocation7 + $0x100]]
        %v244 = vstv %s243
        %v245 = vmul.f32 %v242, %v244
        %v246 = vadd.f32 %v240, %v245
        %s247 = scalar_lea.vmem %s199, 6 [#allocation2]
        %v248 = vld [vmem:[%s247] sm:$0x3]
        %s249 = sld [smem:[#allocation7 + $0x180]]
        %v250 = vstv %s249
        %v251 = vmul.f32 %v248, %v250
        %v252 = vadd.f32 %v246, %v251
        %s253 = sld [smem:[#allocation8]]
        %v254 = vstv %s253
        %v255 = vadd.f32 %v252, %v254
        %v256 = vmax.f32 %v231, 0.001
        %v257 = vmin.f32 %v256, 0.999
        %v258 = vadd.f32 %v257, 1e-08
        %v259 = vsub.f32 1.0, %v258
        %v260 = vsub.f32 0.0, %v255
        %v261 = vmul.f32 %v260, 1.442695
        %v262 = vpow.pop %v261
        %v263 = vmul.f32 %v259, %v262
        %v264 = vadd.f32 %v258, %v263
        %v265 = vrcp.pop %v264
        %v266 = vmul.f32 %v258, %v265
        %267 = vst [vmem:[%s230] sm:$0x3] %v266
        %v268 = vld [vmem:[%s199] sm:$0x3]
        %s269 = sld [smem:[#allocation7 + $0x1]]
        %v270 = vstv %s269
        %v271 = vmul.f32 %v268, %v270
        %v272 = vld [vmem:[%s235] sm:$0x3]
        %s273 = sld [smem:[#allocation7 + $0x81]]
        %v274 = vstv %s273
        %v275 = vmul.f32 %v272, %v274
        %v276 = vadd.f32 %v271, %v275
        %v277 = vld [vmem:[%s241] sm:$0x3]
        %s278 = sld [smem:[#allocation7 + $0x101]]
        %v279 = vstv %s278
        %v280 = vmul.f32 %v277, %v279
        %v281 = vadd.f32 %v276, %v280
        %v282 = vld [vmem:[%s247] sm:$0x3]
        %s283 = sld [smem:[#allocation7 + $0x181]]
        %v284 = vstv %s283
        %v285 = vmul.f32 %v282, %v284
        %v286 = vadd.f32 %v281, %v285
        %s287 = sld [smem:[#allocation8 + $0x1]]
        %v288 = vstv %s287
        %v289 = vadd.f32 %v286, %v288
        %v290 = vmax.f32 %v272, 0.001
        %v291 = vmin.f32 %v290, 0.999
        %v292 = vadd.f32 %v291, 1e-08
        %v293 = vsub.f32 1.0, %v292
        %v294 = vsub.f32 0.0, %v289
        %v295 = vmul.f32 %v294, 1.442695
        %v296 = vpow.pop %v295
        %v297 = vmul.f32 %v293, %v296
        %v298 = vadd.f32 %v292, %v297
        %v299 = vrcp.pop %v298
        %v300 = vmul.f32 %v292, %v299
        %s301 = scalar_lea.vmem %s230, 2 [#allocation9]
        %302 = vst [vmem:[%s301] sm:$0x3] %v300
        %v303 = vld [vmem:[%s199] sm:$0x3]
        %s304 = sld [smem:[#allocation7 + $0x2]]
        %v305 = vstv %s304
        %v306 = vmul.f32 %v303, %v305
        %v307 = vld [vmem:[%s235] sm:$0x3]
        %s308 = sld [smem:[#allocation7 + $0x82]]
        %v309 = vstv %s308
        %v310 = vmul.f32 %v307, %v309
        %v311 = vadd.f32 %v306, %v310
        %v312 = vld [vmem:[%s241] sm:$0x3]
        %s313 = sld [smem:[#allocation7 + $0x102]]
        %v314 = vstv %s313
        %v315 = vmul.f32 %v312, %v314
        %v316 = vadd.f32 %v311, %v315
        %v317 = vld [vmem:[%s247] sm:$0x3]
        %s318 = sld [smem:[#allocation7 + $0x182]]
        %v319 = vstv %s318
        %v320 = vmul.f32 %v317, %v319
        %v321 = vadd.f32 %v316, %v320
        %s322 = sld [smem:[#allocation8 + $0x2]]
        %v323 = vstv %s322
        %v324 = vadd.f32 %v321, %v323
        %v325 = vmax.f32 %v312, 0.001
        %v326 = vmin.f32 %v325, 0.999
        %v327 = vadd.f32 %v326, 1e-08
        %v328 = vsub.f32 1.0, %v327
        %v329 = vsub.f32 0.0, %v324
        %v330 = vmul.f32 %v329, 1.442695
        %v331 = vpow.pop %v330
        %v332 = vmul.f32 %v328, %v331
        %v333 = vadd.f32 %v327, %v332
        %v334 = vrcp.pop %v333
        %v335 = vmul.f32 %v327, %v334
        %s336 = scalar_lea.vmem %s230, 4 [#allocation9]
        %337 = vst [vmem:[%s336] sm:$0x3] %v335
        %v338 = vld [vmem:[%s199] sm:$0x3]
        %s339 = sld [smem:[#allocation7 + $0x3]]
        %v340 = vstv %s339
        %v341 = vmul.f32 %v338, %v340
        %v342 = vld [vmem:[%s235] sm:$0x3]
        %s343 = sld [smem:[#allocation7 + $0x83]]
        %v344 = vstv %s343
        %v345 = vmul.f32 %v342, %v344
        %v346 = vadd.f32 %v341, %v345
        %v347 = vld [vmem:[%s241] sm:$0x3]
        %s348 = sld [smem:[#allocation7 + $0x103]]
        %v349 = vstv %s348
        %v350 = vmul.f32 %v347, %v349
        %v351 = vadd.f32 %v346, %v350
        %v352 = vld [vmem:[%s247] sm:$0x3]
        %s353 = sld [smem:[#allocation7 + $0x183]]
        %v354 = vstv %s353
        %v355 = vmul.f32 %v352, %v354
        %v356 = vadd.f32 %v351, %v355
        %s357 = sld [smem:[#allocation8 + $0x3]]
        %v358 = vstv %s357
        %v359 = vadd.f32 %v356, %v358
        %v360 = vmax.f32 %v352, 0.001
        %v361 = vmin.f32 %v360, 0.999
        %v362 = vadd.f32 %v361, 1e-08
        %v363 = vsub.f32 1.0, %v362
        %v364 = vsub.f32 0.0, %v359
        %v365 = vmul.f32 %v364, 1.442695
        %v366 = vpow.pop %v365
        %v367 = vmul.f32 %v363, %v366
        %v368 = vadd.f32 %v362, %v367
        %v369 = vrcp.pop %v368
        %v370 = vmul.f32 %v362, %v369
        %s371 = scalar_lea.vmem %s230, 6 [#allocation9]
        %372 = vst [vmem:[%s371] sm:$0x3] %v370
        %s373 = sand.u32 %s114, 1
        %s374 = scalar_lea.sflag [#allocation4], %s373
        %s375 = sand.u32 %s114, 1
        %s376 = smul.addr %s375, 8
        %s377 = scalar_lea.vmem [#allocation9], %s376
        // Predicated region
        $region45: #{tpu_custom_call.1} parent=31 // pred_check
          %p378 = pneg %p124
        $region46: #{tpu_custom_call.1} parent=31 // pred_check_branch
          %380 = sbr.rel (%p378) target = $region48
        $region47: #{tpu_custom_call.1} parent=31 // pred_region
          %s382 = ssub.s32 128, 128
          %383 = vsyncadd %s374, %s382
          %s384 = smul.addr %s26, 4
          %s385 = sadd.s32 %s27, %s384
          %s386 = smul.addr %s385, 32
          %s387 = scalar_lea.hbm %s3, %s386
          %s388 = sshll.u32 %s377, 4
          %s389 = int_to_ptr.vmem [resolvable:$true] %s388
          %394 = dma.vmem_to_hbm [thread:$0]  %s389, 128, %s387, %s374, 32, 32, 2
        $region48: #{tpu_custom_call.1} parent=31 // pred_fallthru
          _
      $region32: #{tpu_custom_call.1} parent=5 // pred_fallthru
        _
      %p395 = scmp.le.s32.totalorder 2, %s17
      // Predicated region
      $region49: #{tpu_custom_call.1} parent=5 // pred_check
        %p396 = pneg %p395
      $region50: #{tpu_custom_call.1} parent=5 // pred_check_branch
        %398 = sbr.rel (%p396) target = $region52
      $region51: #{tpu_custom_call.1} parent=5 // pred_region
        %s399 = ssub.s32 %s17, 2
        // Predicated region
        $region53: #{tpu_custom_call.1} parent=51 // pred_check
          %p400 = pneg %p130
        $region54: #{tpu_custom_call.1} parent=51 // pred_check_branch
          %402 = sbr.rel (%p400) target = $region56
        $region55: #{tpu_custom_call.1} parent=51 // pred_region
          %s403 = sand.u32 %s115, 1
          %s404 = scalar_lea.sflag [#allocation4], %s403
          %s405 = sand.u32 %s115, 1
          %s406 = smul.addr %s405, 8
          %s407 = scalar_lea.vmem [#allocation9], %s406
          %408 = dma.done %s404, 128
        $region56: #{tpu_custom_call.1} parent=51 // pred_fallthru
          _
      $region52: #{tpu_custom_call.1} parent=5 // pred_fallthru
        _
    $region6: #{tpu_custom_call.1} parent=1 // loop_footer
      %s21 = sadd.s32 1, %s17
    $region7: #{tpu_custom_call.1} parent=1 // loop_footer_branch
      %16 = sbr.rel target = $region3
    $region8: #{tpu_custom_call.1} parent=1 // loop_exit
      _
    %409 = vsyncpa [#allocation3], 1
    %s410 = scalar_lea.sflag [#allocation3], 1
    %411 = vsyncpa %s410, 1
    %412 = vsyncpa [#allocation4], 1
    %s413 = scalar_lea.sflag [#allocation4], 1
    %414 = vsyncpa %s413, 1
    %415 = vsyncpa [#allocation5], 1
    %s416 = scalar_lea.sflag [#allocation5], 1
    %417 = vsyncpa %s416, 1
    %418 = vsyncpa [#allocation6], 1
    %s419 = scalar_lea.sflag [#allocation6], 1
    %420 = vsyncpa %s419, 1

</llo_original>
